<compile_context>
chip_gen: v5e
topology: v5e:2x2
jax: 0.10.0
libtpu: 0.0.40
codegen_flags: <defaults>
</compile_context>

<pallas_src>
import functools

import jax
import jax.numpy as jnp
from jax.experimental import pallas as pl
from jax.experimental.pallas import tpu as pltpu


def _leaky_relu(v, slope):
    return jnp.where(v > 0, v, slope * v)


def _dgcn_kernel(x_ref, wg_ref, bg_ref, bns_ref, bnb_ref,
                 wcog_ref, wcox_ref, bco_ref, wd_ref, bd_ref, o_ref,
                 *, negative_slope):
    f32 = jnp.float32
    x = x_ref[0].astype(f32)                                    # (C_in, N)
    c_in, n = x.shape

    # ---- global branch: GAP -> 1x1 conv -> BN(folded) -> LeakyReLU --------
    # Broadcast the pooled vector to all N positions up front; every following
    # op in this branch is per-position, so this equals torch's expand-after.
    g = jnp.broadcast_to(jnp.mean(x, axis=1, keepdims=True), (c_in, n))
    g = jnp.dot(wg_ref[...].astype(f32), g, preferred_element_type=f32)
    g = g + bg_ref[...].astype(f32)
    g = g * bns_ref[...].astype(f32) + bnb_ref[...].astype(f32)
    g = _leaky_relu(g, negative_slope)                          # (C_in, N)

    # ---- dynamic adjacency: Conv1x1(2C->N) on cat([g, x]) == 2 matmuls ----
    adj = (jnp.dot(wcog_ref[...].astype(f32), g, preferred_element_type=f32)
           + jnp.dot(wcox_ref[...].astype(f32), x, preferred_element_type=f32)
           + bco_ref[...].astype(f32))                          # (N, N)
    adj = 1.0 / (1.0 + jnp.exp(-adj))                           # sigmoid (EUP)

    # ---- dynamic GCN --------------------------------------------------------
    y = _leaky_relu(jnp.dot(x, adj, preferred_element_type=f32),
                    negative_slope)                             # (C_in, N)
    out = jnp.dot(wd_ref[...].astype(f32), y, preferred_element_type=f32)
    out = _leaky_relu(out + bd_ref[...].astype(f32), negative_slope)

    o_ref[0] = out.astype(o_ref.dtype)                          # (C_out, N)


def dynamic_graph_convolution_pallas(x, params, *, negative_slope=0.2):
    """x: (B, in_features, num_nodes)  ->  (B, out_features, num_nodes)."""
    B, C_in, N = x.shape
    wg = params["w_global"]                              # (C_in, C_in)
    bg = params["b_global"].reshape(C_in, 1)
    bns = params["bn_scale"].reshape(C_in, 1)
    bnb = params["bn_shift"].reshape(C_in, 1)
    wco = params["w_co"]                                 # (N, 2*C_in)
    wco_g = wco[:, :C_in]                                # multiplies x_glb part
    wco_x = wco[:, C_in:]                                # multiplies x part
    bco = params["b_co"].reshape(N, 1)
    wd = params["w_dynamic"]                             # (C_out, C_in)
    C_out = wd.shape[0]
    bd = params["b_dynamic"].reshape(C_out, 1)

    const = lambda b: (0, 0)                             # weights stay resident
    grid_spec = pltpu.PrefetchScalarGridSpec(
        num_scalar_prefetch=0,
        grid=(B,),
        in_specs=[
            pl.BlockSpec((1, C_in, N), lambda b: (b, 0, 0)),   # x, per sample
            pl.BlockSpec((C_in, C_in), const),                 # w_global
            pl.BlockSpec((C_in, 1), const),                    # b_global
            pl.BlockSpec((C_in, 1), const),                    # bn_scale
            pl.BlockSpec((C_in, 1), const),                    # bn_shift
            pl.BlockSpec((N, C_in), const),                    # w_co (global half)
            pl.BlockSpec((N, C_in), const),                    # w_co (x half)
            pl.BlockSpec((N, 1), const),                       # b_co
            pl.BlockSpec((C_out, C_in), const),                # w_dynamic
            pl.BlockSpec((C_out, 1), const),                   # b_dynamic
        ],
        out_specs=pl.BlockSpec((1, C_out, N), lambda b: (b, 0, 0)),
    )

    return pl.pallas_call(
        functools.partial(_dgcn_kernel, negative_slope=negative_slope),
        out_shape=jax.ShapeDtypeStruct((B, C_out, N), x.dtype),
        grid_spec=grid_spec,
        compiler_params=pltpu.CompilerParams(
            # Samples are fully independent -> shard batch across TCs (v7x).
            dimension_semantics=("parallel",),
        ),
    )(x, wg, bg, bns, bnb, wco_g, wco_x, bco, wd, bd)


class DynamicGraphConvolution:
    """Module-like wrapper mirroring the nn.Module interface (eval-mode BN)."""

    def __init__(self, in_features, out_features, num_nodes, key,
                 dtype=jnp.float32, eps=1e-5):
        ks = jax.random.split(key, 8)

        def u(k, shape, fan_in):
            bound = 1.0 / (fan_in ** 0.5)
            return jax.random.uniform(k, shape, dtype, -bound, bound)

        self.num_nodes = num_nodes
        self.params = {
            "w_global": u(ks[0], (in_features, in_features), in_features),
            "b_global": u(ks[1], (in_features,), in_features),
            "w_co": u(ks[2], (num_nodes, 2 * in_features), 2 * in_features),
            "b_co": u(ks[3], (num_nodes,), 2 * in_features),
            "w_dynamic": u(ks[4], (out_features, in_features), in_features),
            "b_dynamic": u(ks[5], (out_features,), in_features),
        }
        # BatchNorm1d (eval mode): fold gamma/beta/running stats -> scale/shift.
        gamma = jax.random.uniform(ks[6], (in_features,), dtype, 0.5, 1.5)
        beta = jax.random.uniform(ks[7], (in_features,), dtype, -0.5, 0.5)
        running_mean = jnp.zeros((in_features,), dtype)
        running_var = jnp.ones((in_features,), dtype)
        scale = gamma / jnp.sqrt(running_var + eps)
        self.params["bn_scale"] = scale
        self.params["bn_shift"] = beta - running_mean * scale

    def __call__(self, x):
        return dynamic_graph_convolution_pallas(x, self.params)


def dgcn_reference(x, params, negative_slope=0.2):
    """Pure-JAX mirror of the torch forward (expand + concat form)."""
    lrelu = lambda v: jnp.where(v > 0, v, negative_slope * v)
    B, C, N = x.shape
    g = jnp.mean(x, axis=2, keepdims=True)                                # GAP
    g = jnp.einsum("oc,bcn->bon", params["w_global"], g)
    g = g + params["b_global"][None, :, None]
    g = g * params["bn_scale"][None, :, None] + params["bn_shift"][None, :, None]
    g = lrelu(g)
    g = jnp.broadcast_to(g, (B, C, N))                                    # expand
    cat = jnp.concatenate([g, x], axis=1)                                 # cat dim=1
    adj = jnp.einsum("oc,bcn->bon", params["w_co"], cat)
    adj = jax.nn.sigmoid(adj + params["b_co"][None, :, None])
    y = lrelu(jnp.matmul(x, adj))
    out = jnp.einsum("oc,bcn->bon", params["w_dynamic"], y)
    out = out + params["b_dynamic"][None, :, None]
    return lrelu(out)


if __name__ == "__main__":
    key = jax.random.PRNGKey(0)
    k_params, k_x = jax.random.split(key)

    B, in_features, out_features, num_nodes = 2, 32, 32, 16
    module = DynamicGraphConvolution(in_features, out_features, num_nodes,
                                     key=k_params)
    x = jax.random.normal(k_x, (B, in_features, num_nodes), dtype=jnp.float32)

    out = jax.block_until_ready(module(x))
    with jax.default_matmul_precision("highest"):
        ref = jax.block_until_ready(dgcn_reference(x, module.params))

    assert out.shape == (B, out_features, num_nodes) and out.dtype == x.dtype
    max_err = float(jnp.max(jnp.abs(out - ref)))
    assert bool(jnp.allclose(out, ref, rtol=1e-3, atol=1e-3)), max_err

    print("KERNEL_OK")
</pallas_src>

<mosaic_0001>
module attributes {stable_mosaic.version = 11 : i64} {
  func.func @_dgcn_kernel(%arg0: i32, %arg1: memref<1x32x16xf32, #tpu.memory_space<vmem>>, %arg2: memref<32x32xf32, #tpu.memory_space<vmem>>, %arg3: memref<32x1xf32, #tpu.memory_space<vmem>>, %arg4: memref<32x1xf32, #tpu.memory_space<vmem>>, %arg5: memref<32x1xf32, #tpu.memory_space<vmem>>, %arg6: memref<16x32xf32, #tpu.memory_space<vmem>>, %arg7: memref<16x32xf32, #tpu.memory_space<vmem>>, %arg8: memref<16x1xf32, #tpu.memory_space<vmem>>, %arg9: memref<32x32xf32, #tpu.memory_space<vmem>>, %arg10: memref<32x1xf32, #tpu.memory_space<vmem>>, %arg11: memref<1x32x16xf32, #tpu.memory_space<vmem>>) attributes {dimension_semantics = [#tpu.dimension_semantics<parallel>], iteration_bounds = array<i64: 2>, scalar_prefetch = 0 : i64, scratch_operands = 0 : i64, tpu.core_type = #tpu.core_type<tc>, window_params = [{transform_indices = @transform_0, window_bounds = array<i64: 1, 32, 16>}, {pipeline_mode = #tpu.pipeline_mode<synchronous>, transform_indices = @transform_1, window_bounds = array<i64: 32, 32>}, {pipeline_mode = #tpu.pipeline_mode<synchronous>, transform_indices = @transform_2, window_bounds = array<i64: 32, 1>}, {pipeline_mode = #tpu.pipeline_mode<synchronous>, transform_indices = @transform_3, window_bounds = array<i64: 32, 1>}, {pipeline_mode = #tpu.pipeline_mode<synchronous>, transform_indices = @transform_4, window_bounds = array<i64: 32, 1>}, {pipeline_mode = #tpu.pipeline_mode<synchronous>, transform_indices = @transform_5, window_bounds = array<i64: 16, 32>}, {pipeline_mode = #tpu.pipeline_mode<synchronous>, transform_indices = @transform_6, window_bounds = array<i64: 16, 32>}, {pipeline_mode = #tpu.pipeline_mode<synchronous>, transform_indices = @transform_7, window_bounds = array<i64: 16, 1>}, {pipeline_mode = #tpu.pipeline_mode<synchronous>, transform_indices = @transform_8, window_bounds = array<i64: 32, 32>}, {pipeline_mode = #tpu.pipeline_mode<synchronous>, transform_indices = @transform_9, window_bounds = array<i64: 32, 1>}, {transform_indices = @transform_10, window_bounds = array<i64: 1, 32, 16>}]} {
    %c0 = arith.constant 0 : index
    %c0_0 = arith.constant 0 : index
    %c0_1 = arith.constant 0 : index
    %0 = vector.load %arg1[%c0, %c0_0, %c0_1] : memref<1x32x16xf32, #tpu.memory_space<vmem>>, vector<1x32x16xf32>
    %1 = vector.shape_cast %0 : vector<1x32x16xf32> to vector<32x16xf32>
    %cst = arith.constant dense<0.000000e+00> : vector<32xf32>
    %2 = vector.multi_reduction <add>, %1, %cst [1] : vector<32x16xf32> to vector<32xf32>
    %3 = vector.shape_cast %2 : vector<32xf32> to vector<32x1xf32>
    %cst_2 = arith.constant 1.600000e+01 : f32
    %4 = vector.broadcast %cst_2 : f32 to vector<32x1xf32>
    %5 = arith.divf %3, %4 : vector<32x1xf32>
    %6 = vector.shape_cast %5 : vector<32x1xf32> to vector<32x1xf32>
    %7 = vector.broadcast %6 : vector<32x1xf32> to vector<32x16xf32>
    %c0_3 = arith.constant 0 : index
    %c0_4 = arith.constant 0 : index
    %8 = vector.load %arg2[%c0_3, %c0_4] : memref<32x32xf32, #tpu.memory_space<vmem>>, vector<32x32xf32>
    %cst_5 = arith.constant dense<0.000000e+00> : vector<32x16xf32>
    %9 = tpu.matmul %8, %7, %cst_5 {dimension_numbers = #tpu.dot_dimension_numbers<[1], [0], [0], [1], [0, 0, 1, 1], [], []>} : vector<32x32xf32>, vector<32x16xf32>, vector<32x16xf32> -> vector<32x16xf32>
    %c0_6 = arith.constant 0 : index
    %c0_7 = arith.constant 0 : index
    %10 = vector.load %arg3[%c0_6, %c0_7] : memref<32x1xf32, #tpu.memory_space<vmem>>, vector<32x1xf32>
    %11 = vector.broadcast %10 : vector<32x1xf32> to vector<32x16xf32>
    %12 = arith.addf %9, %11 : vector<32x16xf32>
    %c0_8 = arith.constant 0 : index
    %c0_9 = arith.constant 0 : index
    %13 = vector.load %arg4[%c0_8, %c0_9] : memref<32x1xf32, #tpu.memory_space<vmem>>, vector<32x1xf32>
    %14 = vector.broadcast %13 : vector<32x1xf32> to vector<32x16xf32>
    %15 = arith.mulf %12, %14 : vector<32x16xf32>
    %c0_10 = arith.constant 0 : index
    %c0_11 = arith.constant 0 : index
    %16 = vector.load %arg5[%c0_10, %c0_11] : memref<32x1xf32, #tpu.memory_space<vmem>>, vector<32x1xf32>
    %17 = vector.broadcast %16 : vector<32x1xf32> to vector<32x16xf32>
    %18 = arith.addf %15, %17 : vector<32x16xf32>
    %cst_12 = arith.constant 0.000000e+00 : f32
    %19 = vector.broadcast %cst_12 : f32 to vector<32x16xf32>
    %20 = arith.cmpf ogt, %18, %19 : vector<32x16xf32>
    %cst_13 = arith.constant 2.000000e-01 : f32
    %21 = vector.broadcast %cst_13 : f32 to vector<32x16xf32>
    %22 = arith.mulf %21, %18 : vector<32x16xf32>
    %23 = arith.select %20, %18, %22 : vector<32x16xi1>, vector<32x16xf32>
    %c0_14 = arith.constant 0 : index
    %c0_15 = arith.constant 0 : index
    %24 = vector.load %arg6[%c0_14, %c0_15] : memref<16x32xf32, #tpu.memory_space<vmem>>, vector<16x32xf32>
    %cst_16 = arith.constant dense<0.000000e+00> : vector<16x16xf32>
    %25 = tpu.matmul %24, %23, %cst_16 {dimension_numbers = #tpu.dot_dimension_numbers<[1], [0], [0], [1], [0, 0, 1, 1], [], []>} : vector<16x32xf32>, vector<32x16xf32>, vector<16x16xf32> -> vector<16x16xf32>
    %c0_17 = arith.constant 0 : index
    %c0_18 = arith.constant 0 : index
    %26 = vector.load %arg7[%c0_17, %c0_18] : memref<16x32xf32, #tpu.memory_space<vmem>>, vector<16x32xf32>
    %cst_19 = arith.constant dense<0.000000e+00> : vector<16x16xf32>
    %27 = tpu.matmul %26, %1, %cst_19 {dimension_numbers = #tpu.dot_dimension_numbers<[1], [0], [0], [1], [0, 0, 1, 1], [], []>} : vector<16x32xf32>, vector<32x16xf32>, vector<16x16xf32> -> vector<16x16xf32>
    %28 = arith.addf %25, %27 : vector<16x16xf32>
    %c0_20 = arith.constant 0 : index
    %c0_21 = arith.constant 0 : index
    %29 = vector.load %arg8[%c0_20, %c0_21] : memref<16x1xf32, #tpu.memory_space<vmem>>, vector<16x1xf32>
    %30 = vector.broadcast %29 : vector<16x1xf32> to vector<16x16xf32>
    %31 = arith.addf %28, %30 : vector<16x16xf32>
    %cst_22 = arith.constant 0.000000e+00 : f32
    %32 = vector.broadcast %cst_22 : f32 to vector<16x16xf32>
    %33 = arith.subf %32, %31 : vector<16x16xf32>
    %34 = math.exp %33 : vector<16x16xf32>
    %cst_23 = arith.constant 1.000000e+00 : f32
    %35 = vector.broadcast %cst_23 : f32 to vector<16x16xf32>
    %36 = arith.addf %35, %34 : vector<16x16xf32>
    %cst_24 = arith.constant 1.000000e+00 : f32
    %37 = vector.broadcast %cst_24 : f32 to vector<16x16xf32>
    %38 = arith.divf %37, %36 : vector<16x16xf32>
    %cst_25 = arith.constant dense<0.000000e+00> : vector<32x16xf32>
    %39 = tpu.matmul %1, %38, %cst_25 {dimension_numbers = #tpu.dot_dimension_numbers<[1], [0], [0], [1], [0, 0, 1, 1], [], []>} : vector<32x16xf32>, vector<16x16xf32>, vector<32x16xf32> -> vector<32x16xf32>
    %cst_26 = arith.constant 0.000000e+00 : f32
    %40 = vector.broadcast %cst_26 : f32 to vector<32x16xf32>
    %41 = arith.cmpf ogt, %39, %40 : vector<32x16xf32>
    %cst_27 = arith.constant 2.000000e-01 : f32
    %42 = vector.broadcast %cst_27 : f32 to vector<32x16xf32>
    %43 = arith.mulf %42, %39 : vector<32x16xf32>
    %44 = arith.select %41, %39, %43 : vector<32x16xi1>, vector<32x16xf32>
    %c0_28 = arith.constant 0 : index
    %c0_29 = arith.constant 0 : index
    %45 = vector.load %arg9[%c0_28, %c0_29] : memref<32x32xf32, #tpu.memory_space<vmem>>, vector<32x32xf32>
    %cst_30 = arith.constant dense<0.000000e+00> : vector<32x16xf32>
    %46 = tpu.matmul %45, %44, %cst_30 {dimension_numbers = #tpu.dot_dimension_numbers<[1], [0], [0], [1], [0, 0, 1, 1], [], []>} : vector<32x32xf32>, vector<32x16xf32>, vector<32x16xf32> -> vector<32x16xf32>
    %c0_31 = arith.constant 0 : index
    %c0_32 = arith.constant 0 : index
    %47 = vector.load %arg10[%c0_31, %c0_32] : memref<32x1xf32, #tpu.memory_space<vmem>>, vector<32x1xf32>
    %48 = vector.broadcast %47 : vector<32x1xf32> to vector<32x16xf32>
    %49 = arith.addf %46, %48 : vector<32x16xf32>
    %cst_33 = arith.constant 0.000000e+00 : f32
    %50 = vector.broadcast %cst_33 : f32 to vector<32x16xf32>
    %51 = arith.cmpf ogt, %49, %50 : vector<32x16xf32>
    %cst_34 = arith.constant 2.000000e-01 : f32
    %52 = vector.broadcast %cst_34 : f32 to vector<32x16xf32>
    %53 = arith.mulf %52, %49 : vector<32x16xf32>
    %54 = arith.select %51, %49, %53 : vector<32x16xi1>, vector<32x16xf32>
    %c0_35 = arith.constant 0 : index
    %c0_36 = arith.constant 0 : index
    %c0_37 = arith.constant 0 : index
    %55 = vector.load %arg11[%c0_35, %c0_36, %c0_37] : memref<1x32x16xf32, #tpu.memory_space<vmem>>, vector<1x32x16xf32>
    %56 = vector.shape_cast %55 : vector<1x32x16xf32> to vector<32x16xf32>
    %57 = vector.shape_cast %54 : vector<32x16xf32> to vector<1x32x16xf32>
    tpu.vector_store %arg11[%c0_35, %c0_36, %c0_37], %57 {strides = array<i32>} : memref<1x32x16xf32, #tpu.memory_space<vmem>>, vector<1x32x16xf32>,
    return
  }
  func.func @transform_0(%arg0: i32) -> (i32, i32, i32) {
    %c0_i32 = arith.constant 0 : i32
    %c0_i32_0 = arith.constant 0 : i32
    %c0_i32_1 = arith.constant 0 : i32
    return %arg0, %c0_i32, %c0_i32_0 : i32, i32, i32
  }
  func.func @transform_1(%arg0: i32) -> (i32, i32) {
    %c0_i32 = arith.constant 0 : i32
    %c0_i32_0 = arith.constant 0 : i32
    %c0_i32_1 = arith.constant 0 : i32
    return %c0_i32, %c0_i32_0 : i32, i32
  }
  func.func @transform_2(%arg0: i32) -> (i32, i32) {
    %c0_i32 = arith.constant 0 : i32
    %c0_i32_0 = arith.constant 0 : i32
    %c0_i32_1 = arith.constant 0 : i32
    return %c0_i32, %c0_i32_0 : i32, i32
  }
  func.func @transform_3(%arg0: i32) -> (i32, i32) {
    %c0_i32 = arith.constant 0 : i32
    %c0_i32_0 = arith.constant 0 : i32
    %c0_i32_1 = arith.constant 0 : i32
    return %c0_i32, %c0_i32_0 : i32, i32
  }
  func.func @transform_4(%arg0: i32) -> (i32, i32) {
    %c0_i32 = arith.constant 0 : i32
    %c0_i32_0 = arith.constant 0 : i32
    %c0_i32_1 = arith.constant 0 : i32
    return %c0_i32, %c0_i32_0 : i32, i32
  }
  func.func @transform_5(%arg0: i32) -> (i32, i32) {
    %c0_i32 = arith.constant 0 : i32
    %c0_i32_0 = arith.constant 0 : i32
    %c0_i32_1 = arith.constant 0 : i32
    return %c0_i32, %c0_i32_0 : i32, i32
  }
  func.func @transform_6(%arg0: i32) -> (i32, i32) {
    %c0_i32 = arith.constant 0 : i32
    %c0_i32_0 = arith.constant 0 : i32
    %c0_i32_1 = arith.constant 0 : i32
    return %c0_i32, %c0_i32_0 : i32, i32
  }
  func.func @transform_7(%arg0: i32) -> (i32, i32) {
    %c0_i32 = arith.constant 0 : i32
    %c0_i32_0 = arith.constant 0 : i32
    %c0_i32_1 = arith.constant 0 : i32
    return %c0_i32, %c0_i32_0 : i32, i32
  }
  func.func @transform_8(%arg0: i32) -> (i32, i32) {
    %c0_i32 = arith.constant 0 : i32
    %c0_i32_0 = arith.constant 0 : i32
    %c0_i32_1 = arith.constant 0 : i32
    return %c0_i32, %c0_i32_0 : i32, i32
  }
  func.func @transform_9(%arg0: i32) -> (i32, i32) {
    %c0_i32 = arith.constant 0 : i32
    %c0_i32_0 = arith.constant 0 : i32
    %c0_i32_1 = arith.constant 0 : i32
    return %c0_i32, %c0_i32_0 : i32, i32
  }
  func.func @transform_10(%arg0: i32) -> (i32, i32, i32) {
    %c0_i32 = arith.constant 0 : i32
    %c0_i32_0 = arith.constant 0 : i32
    %c0_i32_1 = arith.constant 0 : i32
    return %arg0, %c0_i32, %c0_i32_0 : i32, i32, i32
  }
}

</mosaic_0001>

<llo_original>
// kernel: tpu_custom_call.1
$region0: #{tpu_custom_call.1}
  #allocation0 [shape = 'u32[]', space=smem, size = 0x4, offset = 0x4, fixed_abs, tag = 'smem constant byte address 0x4 - core index']
  #allocation1 [shape = 'u32[72,128]{1,0:T(1,128)}', space=vmem, size = 0x9000, scoped, tag = 'internal scratch']
  %s0 = inlined_call_operand.vmem [shape: f32[2,32,16], index: 0, kind: input, shape index: {}]
  %s1 = inlined_call_operand.vmem [shape: f32[32,32], index: 1, kind: input, shape index: {}]
  %s2 = inlined_call_operand.vmem [shape: f32[32,1], index: 2, kind: input, shape index: {}]
  %s3 = inlined_call_operand.vmem [shape: f32[32,1], index: 3, kind: input, shape index: {}]
  %s4 = inlined_call_operand.vmem [shape: f32[32,1], index: 4, kind: input, shape index: {}]
  %s5 = inlined_call_operand.vmem [shape: f32[16,32], index: 5, kind: input, shape index: {}]
  %s6 = inlined_call_operand.vmem [shape: f32[16,32], index: 6, kind: input, shape index: {}]
  %s7 = inlined_call_operand.vmem [shape: f32[16,1], index: 7, kind: input, shape index: {}]
  %s8 = inlined_call_operand.vmem [shape: f32[32,32], index: 8, kind: input, shape index: {}]
  %s9 = inlined_call_operand.vmem [shape: f32[32,1], index: 9, kind: input, shape index: {}]
  %s10 = inlined_call_operand.vmem [shape: f32[2,32,16], index: 10, kind: output, shape index: {}]
  %s11 = sld [smem:[#allocation0]]
  $region73: #{tpu_custom_call.1} parent=0
    _
  %s13 = ssub.s32 1, %s11
  %s14 = scalar_select 0, %s13, %s11
  loop: start=0, step=1, limit=4
  $region2: #{tpu_custom_call.1} parent=0 // loop_pre_header
    _
  $region3: #{tpu_custom_call.1} parent=0 // loop_header
    %s16 = sphi 0, %s20
    %p17 = scmp.ge.s32.totalorder %s16, 4
    %s26 = sphi 0, %s28
    %s29 = sphi 0, %s26
    %s30 = sphi 0, %s29
    %s46 = sphi 0, %s30
    %s50 = sphi 0, %s50
    %s52 = sphi 0, %s50
    %s53 = sphi 0, %s52
    %s67 = sphi 0, %s53
    %s71 = sphi 0, %s71
    %s73 = sphi 0, %s71
    %s74 = sphi 0, %s73
    %s88 = sphi 0, %s74
    %s92 = sphi 0, %s92
    %s94 = sphi 0, %s92
    %s95 = sphi 0, %s94
    %s109 = sphi 0, %s95
    %s113 = sphi 0, %s113
    %s115 = sphi 0, %s113
    %s116 = sphi 0, %s115
    %s130 = sphi 0, %s116
    %s134 = sphi 0, %s134
    %s136 = sphi 0, %s134
    %s137 = sphi 0, %s136
    %s151 = sphi 0, %s137
    %s155 = sphi 0, %s155
    %s157 = sphi 0, %s155
    %s158 = sphi 0, %s157
    %s172 = sphi 0, %s158
    %s176 = sphi 0, %s176
    %s178 = sphi 0, %s176
    %s179 = sphi 0, %s178
    %s193 = sphi 0, %s179
    %s197 = sphi 0, %s197
    %s199 = sphi 0, %s197
    %s200 = sphi 0, %s199
    %s214 = sphi 0, %s200
    %s218 = sphi 0, %s218
    %s220 = sphi 0, %s218
    %s221 = sphi 0, %s220
    %s235 = sphi 0, %s221
    %s241 = sphi 0, %s243
    %s244 = sphi 0, %s241
    %s245 = sphi 0, %s244
    %s261 = sphi 0, %s245
  $region4: #{tpu_custom_call.1} parent=0 // loop_header_branch
    %19 = sbr.rel (%p17) target = $region8
  $region5: #{tpu_custom_call.1} parent=0 // loop_body
    %s21 = ssub.s32 %s16, 1
    %s22 = ssub.s32 %s16, 2
    %s23 = sadd.s32 %s16, 1
    %s24 = ssub.s32 %s16, %s23
    %p25 = scmp.eq.s32.totalorder %s24, 0
    %s27 = sadd.s32 %s26, 1
    %s28 = scalar_select %p25, %s26, %s27
    %p31 = pneg %p25
    %p32 = scmp.eq.s32.totalorder %s16, 1
    %p33 = por %p31, %p32
    %p34 = scmp.ne.s32.totalorder %s26, %s29
    %p35 = scmp.eq.s32.totalorder %s16, 0
    %p36 = por %p34, %p35
    %p37 = scmp.ne.s32.totalorder %s26, %s29
    %p38 = scmp.eq.s32.totalorder %s21, 1
    %p39 = por %p37, %p38
    %p40 = scmp.ne.s32.totalorder %s29, %s30
    %p41 = scmp.eq.s32.totalorder %s21, 0
    %p42 = por %p40, %p41
    %p43 = scmp.ne.s32.totalorder %s29, %s30
    %p44 = scmp.eq.s32.totalorder %s22, 1
    %p45 = por %p43, %p44
    %p47 = scmp.ne.s32.totalorder %s30, %s46
    %p48 = scmp.eq.s32.totalorder %s22, 0
    %p49 = por %p47, %p48
    %s51 = sadd.s32 %s50, 1
    %p54 = scmp.eq.s32.totalorder %s16, 1
    %p55 = scmp.ne.s32.totalorder %s50, %s52
    %p56 = scmp.eq.s32.totalorder %s16, 0
    %p57 = por %p55, %p56
    %p58 = scmp.ne.s32.totalorder %s50, %s52
    %p59 = scmp.eq.s32.totalorder %s21, 1
    %p60 = por %p58, %p59
    %p61 = scmp.ne.s32.totalorder %s52, %s53
    %p62 = scmp.eq.s32.totalorder %s21, 0
    %p63 = por %p61, %p62
    %p64 = scmp.ne.s32.totalorder %s52, %s53
    %p65 = scmp.eq.s32.totalorder %s22, 1
    %p66 = por %p64, %p65
    %p68 = scmp.ne.s32.totalorder %s53, %s67
    %p69 = scmp.eq.s32.totalorder %s22, 0
    %p70 = por %p68, %p69
    %s72 = sadd.s32 %s71, 1
    %p75 = scmp.eq.s32.totalorder %s16, 1
    %p76 = scmp.ne.s32.totalorder %s71, %s73
    %p77 = scmp.eq.s32.totalorder %s16, 0
    %p78 = por %p76, %p77
    %p79 = scmp.ne.s32.totalorder %s71, %s73
    %p80 = scmp.eq.s32.totalorder %s21, 1
    %p81 = por %p79, %p80
    %p82 = scmp.ne.s32.totalorder %s73, %s74
    %p83 = scmp.eq.s32.totalorder %s21, 0
    %p84 = por %p82, %p83
    %p85 = scmp.ne.s32.totalorder %s73, %s74
    %p86 = scmp.eq.s32.totalorder %s22, 1
    %p87 = por %p85, %p86
    %p89 = scmp.ne.s32.totalorder %s74, %s88
    %p90 = scmp.eq.s32.totalorder %s22, 0
    %p91 = por %p89, %p90
    %s93 = sadd.s32 %s92, 1
    %p96 = scmp.eq.s32.totalorder %s16, 1
    %p97 = scmp.ne.s32.totalorder %s92, %s94
    %p98 = scmp.eq.s32.totalorder %s16, 0
    %p99 = por %p97, %p98
    %p100 = scmp.ne.s32.totalorder %s92, %s94
    %p101 = scmp.eq.s32.totalorder %s21, 1
    %p102 = por %p100, %p101
    %p103 = scmp.ne.s32.totalorder %s94, %s95
    %p104 = scmp.eq.s32.totalorder %s21, 0
    %p105 = por %p103, %p104
    %p106 = scmp.ne.s32.totalorder %s94, %s95
    %p107 = scmp.eq.s32.totalorder %s22, 1
    %p108 = por %p106, %p107
    %p110 = scmp.ne.s32.totalorder %s95, %s109
    %p111 = scmp.eq.s32.totalorder %s22, 0
    %p112 = por %p110, %p111
    %s114 = sadd.s32 %s113, 1
    %p117 = scmp.eq.s32.totalorder %s16, 1
    %p118 = scmp.ne.s32.totalorder %s113, %s115
    %p119 = scmp.eq.s32.totalorder %s16, 0
    %p120 = por %p118, %p119
    %p121 = scmp.ne.s32.totalorder %s113, %s115
    %p122 = scmp.eq.s32.totalorder %s21, 1
    %p123 = por %p121, %p122
    %p124 = scmp.ne.s32.totalorder %s115, %s116
    %p125 = scmp.eq.s32.totalorder %s21, 0
    %p126 = por %p124, %p125
    %p127 = scmp.ne.s32.totalorder %s115, %s116
    %p128 = scmp.eq.s32.totalorder %s22, 1
    %p129 = por %p127, %p128
    %p131 = scmp.ne.s32.totalorder %s116, %s130
    %p132 = scmp.eq.s32.totalorder %s22, 0
    %p133 = por %p131, %p132
    %s135 = sadd.s32 %s134, 1
    %p138 = scmp.eq.s32.totalorder %s16, 1
    %p139 = scmp.ne.s32.totalorder %s134, %s136
    %p140 = scmp.eq.s32.totalorder %s16, 0
    %p141 = por %p139, %p140
    %p142 = scmp.ne.s32.totalorder %s134, %s136
    %p143 = scmp.eq.s32.totalorder %s21, 1
    %p144 = por %p142, %p143
    %p145 = scmp.ne.s32.totalorder %s136, %s137
    %p146 = scmp.eq.s32.totalorder %s21, 0
    %p147 = por %p145, %p146
    %p148 = scmp.ne.s32.totalorder %s136, %s137
    %p149 = scmp.eq.s32.totalorder %s22, 1
    %p150 = por %p148, %p149
    %p152 = scmp.ne.s32.totalorder %s137, %s151
    %p153 = scmp.eq.s32.totalorder %s22, 0
    %p154 = por %p152, %p153
    %s156 = sadd.s32 %s155, 1
    %p159 = scmp.eq.s32.totalorder %s16, 1
    %p160 = scmp.ne.s32.totalorder %s155, %s157
    %p161 = scmp.eq.s32.totalorder %s16, 0
    %p162 = por %p160, %p161
    %p163 = scmp.ne.s32.totalorder %s155, %s157
    %p164 = scmp.eq.s32.totalorder %s21, 1
    %p165 = por %p163, %p164
    %p166 = scmp.ne.s32.totalorder %s157, %s158
    %p167 = scmp.eq.s32.totalorder %s21, 0
    %p168 = por %p166, %p167
    %p169 = scmp.ne.s32.totalorder %s157, %s158
    %p170 = scmp.eq.s32.totalorder %s22, 1
    %p171 = por %p169, %p170
    %p173 = scmp.ne.s32.totalorder %s158, %s172
    %p174 = scmp.eq.s32.totalorder %s22, 0
    %p175 = por %p173, %p174
    %s177 = sadd.s32 %s176, 1
    %p180 = scmp.eq.s32.totalorder %s16, 1
    %p181 = scmp.ne.s32.totalorder %s176, %s178
    %p182 = scmp.eq.s32.totalorder %s16, 0
    %p183 = por %p181, %p182
    %p184 = scmp.ne.s32.totalorder %s176, %s178
    %p185 = scmp.eq.s32.totalorder %s21, 1
    %p186 = por %p184, %p185
    %p187 = scmp.ne.s32.totalorder %s178, %s179
    %p188 = scmp.eq.s32.totalorder %s21, 0
    %p189 = por %p187, %p188
    %p190 = scmp.ne.s32.totalorder %s178, %s179
    %p191 = scmp.eq.s32.totalorder %s22, 1
    %p192 = por %p190, %p191
    %p194 = scmp.ne.s32.totalorder %s179, %s193
    %p195 = scmp.eq.s32.totalorder %s22, 0
    %p196 = por %p194, %p195
    %s198 = sadd.s32 %s197, 1
    %p201 = scmp.eq.s32.totalorder %s16, 1
    %p202 = scmp.ne.s32.totalorder %s197, %s199
    %p203 = scmp.eq.s32.totalorder %s16, 0
    %p204 = por %p202, %p203
    %p205 = scmp.ne.s32.totalorder %s197, %s199
    %p206 = scmp.eq.s32.totalorder %s21, 1
    %p207 = por %p205, %p206
    %p208 = scmp.ne.s32.totalorder %s199, %s200
    %p209 = scmp.eq.s32.totalorder %s21, 0
    %p210 = por %p208, %p209
    %p211 = scmp.ne.s32.totalorder %s199, %s200
    %p212 = scmp.eq.s32.totalorder %s22, 1
    %p213 = por %p211, %p212
    %p215 = scmp.ne.s32.totalorder %s200, %s214
    %p216 = scmp.eq.s32.totalorder %s22, 0
    %p217 = por %p215, %p216
    %s219 = sadd.s32 %s218, 1
    %p222 = scmp.eq.s32.totalorder %s16, 1
    %p223 = scmp.ne.s32.totalorder %s218, %s220
    %p224 = scmp.eq.s32.totalorder %s16, 0
    %p225 = por %p223, %p224
    %p226 = scmp.ne.s32.totalorder %s218, %s220
    %p227 = scmp.eq.s32.totalorder %s21, 1
    %p228 = por %p226, %p227
    %p229 = scmp.ne.s32.totalorder %s220, %s221
    %p230 = scmp.eq.s32.totalorder %s21, 0
    %p231 = por %p229, %p230
    %p232 = scmp.ne.s32.totalorder %s220, %s221
    %p233 = scmp.eq.s32.totalorder %s22, 1
    %p234 = por %p232, %p233
    %p236 = scmp.ne.s32.totalorder %s221, %s235
    %p237 = scmp.eq.s32.totalorder %s22, 0
    %p238 = por %p236, %p237
    %s239 = ssub.s32 %s16, %s23
    %p240 = scmp.eq.s32.totalorder %s239, 0
    %s242 = sadd.s32 %s241, 1
    %s243 = scalar_select %p240, %s241, %s242
    %p246 = pneg %p240
    %p247 = scmp.eq.s32.totalorder %s16, 1
    %p248 = por %p246, %p247
    %p249 = scmp.ne.s32.totalorder %s241, %s244
    %p250 = scmp.eq.s32.totalorder %s16, 0
    %p251 = por %p249, %p250
    %p252 = scmp.ne.s32.totalorder %s241, %s244
    %p253 = scmp.eq.s32.totalorder %s21, 1
    %p254 = por %p252, %p253
    %p255 = scmp.ne.s32.totalorder %s244, %s245
    %p256 = scmp.eq.s32.totalorder %s21, 0
    %p257 = por %p255, %p256
    %p258 = scmp.ne.s32.totalorder %s244, %s245
    %p259 = scmp.eq.s32.totalorder %s22, 1
    %p260 = por %p258, %p259
    %p262 = scmp.ne.s32.totalorder %s245, %s261
    %p263 = scmp.eq.s32.totalorder %s22, 0
    %p264 = por %p262, %p263
    %p265 = scmp.le.s32.totalorder 1, %s16
    %p266 = scmp.lt.s32.totalorder %s16, 3
    %p267 = pnand %p265, %p266
    %p268 = pneg %p267
    // Predicated region
    $region9: #{tpu_custom_call.1} parent=5 // pred_check
      _
    $region10: #{tpu_custom_call.1} parent=5 // pred_check_branch
      %270 = sbr.rel (%p267) target = $region12
    $region11: #{tpu_custom_call.1} parent=5 // pred_region
      %s271 = ssub.s32 %s16, 1
      // Predicated region
      $region13: #{tpu_custom_call.1} parent=11 // pred_check
        %p272 = pneg %p63
      $region14: #{tpu_custom_call.1} parent=11 // pred_check_branch
        %274 = sbr.rel (%p272) target = $region16
      $region15: #{tpu_custom_call.1} parent=11 // pred_region
        _
      $region16: #{tpu_custom_call.1} parent=11 // pred_fallthru
        _
      // Predicated region
      $region17: #{tpu_custom_call.1} parent=11 // pred_check
        %p275 = pneg %p84
      $region18: #{tpu_custom_call.1} parent=11 // pred_check_branch
        %277 = sbr.rel (%p275) target = $region20
      $region19: #{tpu_custom_call.1} parent=11 // pred_region
        _
      $region20: #{tpu_custom_call.1} parent=11 // pred_fallthru
        _
      // Predicated region
      $region21: #{tpu_custom_call.1} parent=11 // pred_check
        %p278 = pneg %p105
      $region22: #{tpu_custom_call.1} parent=11 // pred_check_branch
        %280 = sbr.rel (%p278) target = $region24
      $region23: #{tpu_custom_call.1} parent=11 // pred_region
        _
      $region24: #{tpu_custom_call.1} parent=11 // pred_fallthru
        _
      // Predicated region
      $region25: #{tpu_custom_call.1} parent=11 // pred_check
        %p281 = pneg %p126
      $region26: #{tpu_custom_call.1} parent=11 // pred_check_branch
        %283 = sbr.rel (%p281) target = $region28
      $region27: #{tpu_custom_call.1} parent=11 // pred_region
        _
      $region28: #{tpu_custom_call.1} parent=11 // pred_fallthru
        _
      // Predicated region
      $region29: #{tpu_custom_call.1} parent=11 // pred_check
        %p284 = pneg %p147
      $region30: #{tpu_custom_call.1} parent=11 // pred_check_branch
        %286 = sbr.rel (%p284) target = $region32
      $region31: #{tpu_custom_call.1} parent=11 // pred_region
        _
      $region32: #{tpu_custom_call.1} parent=11 // pred_fallthru
        _
      // Predicated region
      $region33: #{tpu_custom_call.1} parent=11 // pred_check
        %p287 = pneg %p168
      $region34: #{tpu_custom_call.1} parent=11 // pred_check_branch
        %289 = sbr.rel (%p287) target = $region36
      $region35: #{tpu_custom_call.1} parent=11 // pred_region
        _
      $region36: #{tpu_custom_call.1} parent=11 // pred_fallthru
        _
      // Predicated region
      $region37: #{tpu_custom_call.1} parent=11 // pred_check
        %p290 = pneg %p189
      $region38: #{tpu_custom_call.1} parent=11 // pred_check_branch
        %292 = sbr.rel (%p290) target = $region40
      $region39: #{tpu_custom_call.1} parent=11 // pred_region
        _
      $region40: #{tpu_custom_call.1} parent=11 // pred_fallthru
        _
      // Predicated region
      $region41: #{tpu_custom_call.1} parent=11 // pred_check
        %p293 = pneg %p210
      $region42: #{tpu_custom_call.1} parent=11 // pred_check_branch
        %295 = sbr.rel (%p293) target = $region44
      $region43: #{tpu_custom_call.1} parent=11 // pred_region
        _
      $region44: #{tpu_custom_call.1} parent=11 // pred_fallthru
        _
      // Predicated region
      $region45: #{tpu_custom_call.1} parent=11 // pred_check
        %p296 = pneg %p231
      $region46: #{tpu_custom_call.1} parent=11 // pred_check_branch
        %298 = sbr.rel (%p296) target = $region48
      $region47: #{tpu_custom_call.1} parent=11 // pred_region
        _
      $region48: #{tpu_custom_call.1} parent=11 // pred_fallthru
        _
    $region12: #{tpu_custom_call.1} parent=5 // pred_fallthru
      _
    %p299 = scmp.lt.s32.totalorder %s16, 2
    // Predicated region
    $region49: #{tpu_custom_call.1} parent=5 // pred_check
      %p300 = pneg %p299
    $region50: #{tpu_custom_call.1} parent=5 // pred_check_branch
      %302 = sbr.rel (%p300) target = $region52
    $region51: #{tpu_custom_call.1} parent=5 // pred_region
      // Predicated region
      $region53: #{tpu_custom_call.1} parent=51 // pred_check
        %p303 = pneg %p36
      $region54: #{tpu_custom_call.1} parent=51 // pred_check_branch
        %305 = sbr.rel (%p303) target = $region56
      $region55: #{tpu_custom_call.1} parent=51 // pred_region
        %p306 = scmp.lt.s32.totalorder %s16, 1
        %s307 = scalar_select %p306, %s16, 1
        %s308 = smul.addr %s307, 4
        %s309 = smul.addr %s308, 8
        %s310 = scalar_lea.vmem %s0, %s309
      $region56: #{tpu_custom_call.1} parent=51 // pred_fallthru
        _
    $region52: #{tpu_custom_call.1} parent=5 // pred_fallthru
      _
    %p311 = scmp.le.s32.totalorder 1, %s16
    %p312 = scmp.lt.s32.totalorder %s16, 3
    %p313 = pnand %p311, %p312
    %p314 = pneg %p313
    // Predicated region
    $region57: #{tpu_custom_call.1} parent=5 // pred_check
      _
    $region58: #{tpu_custom_call.1} parent=5 // pred_check_branch
      %316 = sbr.rel (%p313) target = $region60
    $region59: #{tpu_custom_call.1} parent=5 // pred_region
      %s317 = ssub.s32 %s16, 1
      %p318 = scmp.lt.s32.totalorder %s21, 1
      %s319 = scalar_select %p318, %s21, 1
      %s320 = smul.addr %s319, 4
      %s321 = smul.addr %s320, 8
      %s322 = scalar_lea.vmem %s0, %s321
      %p323 = pneg %p42
      %p324 = pneg %p39
      %p325 = pneg %p63
      %p326 = pneg %p60
      %p327 = pneg %p84
      %p328 = pneg %p81
      %p329 = pneg %p105
      %p330 = pneg %p102
      %p331 = pneg %p126
      %p332 = pneg %p123
      %p333 = pneg %p147
      %p334 = pneg %p144
      %p335 = pneg %p168
      %p336 = pneg %p165
      %p337 = pneg %p189
      %p338 = pneg %p186
      %p339 = pneg %p210
      %p340 = pneg %p207
      %p341 = pneg %p231
      %p342 = pneg %p228
      %p343 = pneg %p257
      %p344 = pneg %p254
      %p345 = scmp.lt.s32.totalorder %s21, 1
      %s346 = scalar_select %p345, %s21, 1
      %s347 = smul.addr %s346, 4
      %s348 = smul.addr %s347, 8
      %s349 = scalar_lea.vmem %s10, %s348
      %p350 = scmp.lt.s32.totalorder %s21, 1
      %s351 = scalar_select %p350, %s21, 1
      %s352 = smul.addr %s351, 4
      %s353 = smul.addr %s352, 8
      %s354 = scalar_lea.vmem %s0, %s353
      %p355 = scmp.lt.s32.totalorder %s21, 1
      %s356 = scalar_select %p355, %s21, 1
      %s357 = smul.addr %s356, 4
      %s358 = smul.addr %s357, 8
      %s359 = scalar_lea.vmem %s10, %s358
      %v360 = vld [vmem:[%s354] sm:$0xff]
      %v361 = vld [vmem:[%s354 + $0x8] sm:$0xff]
      %v362 = vld [vmem:[%s354 + $0x10] sm:$0xff]
      %v363 = vld [vmem:[%s354 + $0x18] sm:$0xff]
      %vm364 = vcmask 130048
      %v365 = vsel %vm364, %v360, 0.0
      %366 = vadd.xlane.f32.xlu0 %v365
      %v367 = vpop.xlane.xlu0 %366
      %v368 = vsel %vm364, %v361, 0.0
      %369 = vadd.xlane.f32.xlu0 %v368
      %v370 = vpop.xlane.xlu0 %369
      %v371 = vsel %vm364, %v362, 0.0
      %372 = vadd.xlane.f32.xlu0 %v371
      %v373 = vpop.xlane.xlu0 %372
      %v374 = vsel %vm364, %v363, 0.0
      %375 = vadd.xlane.f32.xlu0 %v374
      %v376 = vpop.xlane.xlu0 %375
      %v377 = vrcp.pop 16.0
      %v378 = vmul.f32 16.0, %v377
      %v379 = vsub.f32 1.0, %v378
      %v380 = vmul.f32 %v377, %v379
      %v381 = vadd.f32 %v377, %v380
      %vm382 = vweird.f32 %v377
      %v383 = vsel %vm382, %v377, %v381
      %v384 = vmul.f32 %v367, %v383
      %v385 = vmul.f32 %v370, %v383
      %v386 = vmul.f32 %v373, %v383
      %v387 = vmul.f32 %v376, %v383
      %v388 = vld [vmem:[%s1] sm:$0xff]
      %v389 = vld [vmem:[%s1 + $0x8] sm:$0xff]
      %v390 = vld [vmem:[%s1 + $0x10] sm:$0xff]
      %v391 = vld [vmem:[%s1 + $0x18] sm:$0xff]
      %v392 = vld [vmem:[%s2] sm:$0xff]
      %v393 = vld [vmem:[%s2 + $0x8] sm:$0xff]
      %v394 = vld [vmem:[%s2 + $0x10] sm:$0xff]
      %v395 = vld [vmem:[%s2 + $0x18] sm:$0xff]
      %397 = vset.pattern.permute.xlu0 0
      %398 = vperm.xlu0 %397, %v392
      %v399 = vpop.permute.xlu0 %398
      %402 = vset.pattern.permute.xlu0 0
      %403 = vperm.xlu0 %402, %v393
      %v404 = vpop.permute.xlu0 %403
      %407 = vset.pattern.permute.xlu0 0
      %408 = vperm.xlu0 %407, %v394
      %v409 = vpop.permute.xlu0 %408
      %412 = vset.pattern.permute.xlu0 0
      %413 = vperm.xlu0 %412, %v395
      %v414 = vpop.permute.xlu0 %413
      %vm416 = vcmask 261120
      %v418 = vsel %vm416, %v388, 0
      %v421 = vsel %vm416, %v389, 0
      %v424 = vsel %vm416, %v390, 0
      %v427 = vsel %vm416, %v391, 0
      %429 = vmatpush.msra.mxu0 0.0
      %430 = vmatpush.msra.mxu0 0.0
      %431 = vmatpush.msra.mxu0 0.0
      %432 = vmatpush.msra.mxu0 0.0
      %433 = vmatpush.msra.mxu0 0.0
      %434 = vmatpush.msra.mxu0 0.0
      %435 = vmatpush.msra.mxu0 0.0
      %436 = vmatpush.msra.mxu0 0.0
      %437 = vmatpush.msra.mxu0 0.0
      %438 = vmatpush.msra.mxu0 0.0
      %439 = vmatpush.msra.mxu0 0.0
      %440 = vmatpush.msra.mxu0 0.0
      %441 = vmatpush.msra.mxu0 %v387
      %442 = vmatpush.msra.mxu0 %v386
      %443 = vmatpush.msra.mxu0 %v385
      %444 = vmatpush.msra.mxu0 %v384
      %445 = vmatmul.f32.gmra.mxu0 %v418
      %v446 = vpop.f32.mrf.mxu0
      %v447 = vadd.f32 %v399, %v446
      %448 = vmatmul.f32.gmra.mxu0 %v421
      %v449 = vpop.f32.mrf.mxu0
      %v450 = vadd.f32 %v404, %v449
      %451 = vmatmul.f32.gmra.mxu0 %v424
      %v452 = vpop.f32.mrf.mxu0
      %v453 = vadd.f32 %v409, %v452
      %454 = vmatmul.f32.gmra.mxu0 %v427
      %v455 = vpop.f32.mrf.mxu0
      %v456 = vadd.f32 %v414, %v455
      %457 = vdwg.mxu0
      %v458 = vld [vmem:[%s3] sm:$0xff]
      %v459 = vld [vmem:[%s3 + $0x8] sm:$0xff]
      %v460 = vld [vmem:[%s3 + $0x10] sm:$0xff]
      %v461 = vld [vmem:[%s3 + $0x18] sm:$0xff]
      %463 = vset.pattern.permute.xlu0 0
      %464 = vperm.xlu0 %463, %v458
      %v465 = vpop.permute.xlu0 %464
      %468 = vset.pattern.permute.xlu0 0
      %469 = vperm.xlu0 %468, %v459
      %v470 = vpop.permute.xlu0 %469
      %473 = vset.pattern.permute.xlu0 0
      %474 = vperm.xlu0 %473, %v460
      %v475 = vpop.permute.xlu0 %474
      %478 = vset.pattern.permute.xlu0 0
      %479 = vperm.xlu0 %478, %v461
      %v480 = vpop.permute.xlu0 %479
      %v482 = vmul.f32 %v447, %v465
      %v483 = vmul.f32 %v450, %v470
      %v484 = vmul.f32 %v453, %v475
      %v485 = vmul.f32 %v456, %v480
      %v486 = vld [vmem:[%s4] sm:$0xff]
      %v487 = vld [vmem:[%s4 + $0x8] sm:$0xff]
      %v488 = vld [vmem:[%s4 + $0x10] sm:$0xff]
      %v489 = vld [vmem:[%s4 + $0x18] sm:$0xff]
      %491 = vset.pattern.permute.xlu0 0
      %492 = vperm.xlu0 %491, %v486
      %v493 = vpop.permute.xlu0 %492
      %496 = vset.pattern.permute.xlu0 0
      %497 = vperm.xlu0 %496, %v487
      %v498 = vpop.permute.xlu0 %497
      %501 = vset.pattern.permute.xlu0 0
      %502 = vperm.xlu0 %501, %v488
      %v503 = vpop.permute.xlu0 %502
      %506 = vset.pattern.permute.xlu0 0
      %507 = vperm.xlu0 %506, %v489
      %v508 = vpop.permute.xlu0 %507
      %v510 = vadd.f32 %v482, %v493
      %v511 = vadd.f32 %v483, %v498
      %v512 = vadd.f32 %v484, %v503
      %v513 = vadd.f32 %v485, %v508
      %vm514 = vcmp.gt.f32.partialorder %v510, 0.0
      %vm515 = vcmp.gt.f32.partialorder %v511, 0.0
      %vm516 = vcmp.gt.f32.partialorder %v512, 0.0
      %vm517 = vcmp.gt.f32.partialorder %v513, 0.0
      %v518 = vmul.f32 %v510, 0.2
      %v519 = vmul.f32 %v511, 0.2
      %v520 = vmul.f32 %v512, 0.2
      %v521 = vmul.f32 %v513, 0.2
      %v522 = vsel %vm514, %v510, %v518
      %v523 = vsel %vm515, %v511, %v519
      %v524 = vsel %vm516, %v512, %v520
      %v525 = vsel %vm517, %v513, %v521
      %v526 = vld [vmem:[%s5] sm:$0xff]
      %v527 = vld [vmem:[%s5 + $0x8] sm:$0xff]
      %v528 = vld [vmem:[%s6] sm:$0xff]
      %v529 = vld [vmem:[%s6 + $0x8] sm:$0xff]
      %v531 = vsel %vm416, %v528, 0
      %v534 = vsel %vm416, %v529, 0
      %536 = vmatpush.msra.mxu0 0.0
      %537 = vmatpush.msra.mxu0 0.0
      %538 = vmatpush.msra.mxu0 0.0
      %539 = vmatpush.msra.mxu0 0.0
      %540 = vmatpush.msra.mxu0 0.0
      %541 = vmatpush.msra.mxu0 0.0
      %542 = vmatpush.msra.mxu0 0.0
      %543 = vmatpush.msra.mxu0 0.0
      %544 = vmatpush.msra.mxu0 0.0
      %545 = vmatpush.msra.mxu0 0.0
      %546 = vmatpush.msra.mxu0 0.0
      %547 = vmatpush.msra.mxu0 0.0
      %548 = vmatpush.msra.mxu0 %v363
      %549 = vmatpush.msra.mxu0 %v362
      %550 = vmatpush.msra.mxu0 %v361
      %551 = vmatpush.msra.mxu0 %v360
      %552 = vmatmul.f32.gmra.mxu0 %v531
      %v553 = vpop.f32.mrf.mxu0
      %v554 = vadd.f32 0.0, %v553
      %555 = vmatmul.f32.gmra.mxu0 %v534
      %v556 = vpop.f32.mrf.mxu0
      %v557 = vadd.f32 0.0, %v556
      %558 = vdwg.mxu0
      %v560 = vsel %vm416, %v526, 0
      %v563 = vsel %vm416, %v527, 0
      %565 = vmatpush.msra.mxu0 0.0
      %566 = vmatpush.msra.mxu0 0.0
      %567 = vmatpush.msra.mxu0 0.0
      %568 = vmatpush.msra.mxu0 0.0
      %569 = vmatpush.msra.mxu0 0.0
      %570 = vmatpush.msra.mxu0 0.0
      %571 = vmatpush.msra.mxu0 0.0
      %572 = vmatpush.msra.mxu0 0.0
      %573 = vmatpush.msra.mxu0 0.0
      %574 = vmatpush.msra.mxu0 0.0
      %575 = vmatpush.msra.mxu0 0.0
      %576 = vmatpush.msra.mxu0 0.0
      %577 = vmatpush.msra.mxu0 %v525
      %578 = vmatpush.msra.mxu0 %v524
      %579 = vmatpush.msra.mxu0 %v523
      %580 = vmatpush.msra.mxu0 %v522
      %581 = vmatmul.f32.gmra.mxu0 %v560
      %v582 = vpop.f32.mrf.mxu0
      %v583 = vadd.f32 %v554, %v582
      %584 = vmatmul.f32.gmra.mxu0 %v563
      %v585 = vpop.f32.mrf.mxu0
      %v586 = vadd.f32 %v557, %v585
      %587 = vdwg.mxu0
      %v588 = vld [vmem:[%s7] sm:$0xff]
      %v589 = vld [vmem:[%s7 + $0x8] sm:$0xff]
      %591 = vset.pattern.permute.xlu0 0
      %592 = vperm.xlu0 %591, %v588
      %v593 = vpop.permute.xlu0 %592
      %596 = vset.pattern.permute.xlu0 0
      %597 = vperm.xlu0 %596, %v589
      %v598 = vpop.permute.xlu0 %597
      %v600 = vadd.f32 %v583, %v593
      %v601 = vadd.f32 %v586, %v598
      %v602 = vsub.f32 0.0, %v600
      %v603 = vsub.f32 0.0, %v601
      %v604 = vmul.f32 %v602, 1.442695
      %v605 = vpow.pop %v604
      %v606 = vmul.f32 %v603, 1.442695
      %v607 = vpow.pop %v606
      %v608 = vadd.f32 %v605, 1.0
      %v609 = vadd.f32 %v607, 1.0
      %v610 = vrcp.pop %v608
      %v611 = vmul.f32 %v608, %v610
      %v612 = vsub.f32 1.0, %v611
      %v613 = vmul.f32 %v610, %v612
      %v614 = vadd.f32 %v610, %v613
      %vm615 = vweird.f32 %v608
      %vm616 = vweird.f32 %v610
      %vm617 = vmor %vm615, %vm616
      %v618 = vsel %vm617, %v610, %v614
      %v619 = vand.u32 2147483647, %v608
      %vm620 = vcmp.eq.f32.partialorder %v619, 8.507059e+37
      %v621 = vand.u32 %v608, 2147483648
      %v622 = vor.u32 1.1754944e-38, %v621
      %v623 = vsel %vm620, %v622, %v618
      %v624 = vmul.f32 1.0, %v623
      %v625 = vrcp.pop %v609
      %v626 = vmul.f32 %v609, %v625
      %v627 = vsub.f32 1.0, %v626
      %v628 = vmul.f32 %v625, %v627
      %v629 = vadd.f32 %v625, %v628
      %vm630 = vweird.f32 %v609
      %vm631 = vweird.f32 %v625
      %vm632 = vmor %vm630, %vm631
      %v633 = vsel %vm632, %v625, %v629
      %v634 = vand.u32 2147483647, %v609
      %vm635 = vcmp.eq.f32.partialorder %v634, 8.507059e+37
      %v636 = vand.u32 %v609, 2147483648
      %v637 = vor.u32 1.1754944e-38, %v636
      %v638 = vsel %vm635, %v637, %v633
      %v639 = vmul.f32 1.0, %v638
      %v641 = vsel %vm364, %v360, 0
      %v644 = vsel %vm364, %v361, 0
      %v647 = vsel %vm364, %v362, 0
      %v650 = vsel %vm364, %v363, 0
      %652 = vmatpush.msra.mxu0 0.0
      %653 = vmatpush.msra.mxu0 0.0
      %654 = vmatpush.msra.mxu0 0.0
      %655 = vmatpush.msra.mxu0 0.0
      %656 = vmatpush.msra.mxu0 0.0
      %657 = vmatpush.msra.mxu0 0.0
      %658 = vmatpush.msra.mxu0 0.0
      %659 = vmatpush.msra.mxu0 0.0
      %660 = vmatpush.msra.mxu0 0.0
      %661 = vmatpush.msra.mxu0 0.0
      %662 = vmatpush.msra.mxu0 0.0
      %663 = vmatpush.msra.mxu0 0.0
      %664 = vmatpush.msra.mxu0 0.0
      %665 = vmatpush.msra.mxu0 0.0
      %666 = vmatpush.msra.mxu0 %v639
      %667 = vmatpush.msra.mxu0 %v624
      %668 = vmatmul.f32.gmra.mxu0 %v641
      %v669 = vpop.f32.mrf.mxu0
      %v670 = vadd.f32 0.0, %v669
      %671 = vmatmul.f32.gmra.mxu0 %v644
      %v672 = vpop.f32.mrf.mxu0
      %v673 = vadd.f32 0.0, %v672
      %674 = vmatmul.f32.gmra.mxu0 %v647
      %v675 = vpop.f32.mrf.mxu0
      %v676 = vadd.f32 0.0, %v675
      %677 = vmatmul.f32.gmra.mxu0 %v650
      %v678 = vpop.f32.mrf.mxu0
      %v679 = vadd.f32 0.0, %v678
      %680 = vdwg.mxu0
      %vm681 = vcmp.gt.f32.partialorder %v670, 0.0
      %vm682 = vcmp.gt.f32.partialorder %v673, 0.0
      %vm683 = vcmp.gt.f32.partialorder %v676, 0.0
      %vm684 = vcmp.gt.f32.partialorder %v679, 0.0
      %v685 = vmul.f32 %v670, 0.2
      %v686 = vmul.f32 %v673, 0.2
      %v687 = vmul.f32 %v676, 0.2
      %v688 = vmul.f32 %v679, 0.2
      %v689 = vsel %vm681, %v670, %v685
      %v690 = vsel %vm682, %v673, %v686
      %v691 = vsel %vm683, %v676, %v687
      %v692 = vsel %vm684, %v679, %v688
      %v693 = vld [vmem:[%s8] sm:$0xff]
      %v694 = vld [vmem:[%s8 + $0x8] sm:$0xff]
      %v695 = vld [vmem:[%s8 + $0x10] sm:$0xff]
      %v696 = vld [vmem:[%s8 + $0x18] sm:$0xff]
      %v697 = vld [vmem:[%s9] sm:$0xff]
      %v698 = vld [vmem:[%s9 + $0x8] sm:$0xff]
      %v699 = vld [vmem:[%s9 + $0x10] sm:$0xff]
      %v700 = vld [vmem:[%s9 + $0x18] sm:$0xff]
      %702 = vset.pattern.permute.xlu0 0
      %703 = vperm.xlu0 %702, %v697
      %v704 = vpop.permute.xlu0 %703
      %707 = vset.pattern.permute.xlu0 0
      %708 = vperm.xlu0 %707, %v698
      %v709 = vpop.permute.xlu0 %708
      %712 = vset.pattern.permute.xlu0 0
      %713 = vperm.xlu0 %712, %v699
      %v714 = vpop.permute.xlu0 %713
      %717 = vset.pattern.permute.xlu0 0
      %718 = vperm.xlu0 %717, %v700
      %v719 = vpop.permute.xlu0 %718
      %v722 = vsel %vm416, %v693, 0
      %v725 = vsel %vm416, %v694, 0
      %v728 = vsel %vm416, %v695, 0
      %v731 = vsel %vm416, %v696, 0
      %733 = vmatpush.msra.mxu0 0.0
      %734 = vmatpush.msra.mxu0 0.0
      %735 = vmatpush.msra.mxu0 0.0
      %736 = vmatpush.msra.mxu0 0.0
      %737 = vmatpush.msra.mxu0 0.0
      %738 = vmatpush.msra.mxu0 0.0
      %739 = vmatpush.msra.mxu0 0.0
      %740 = vmatpush.msra.mxu0 0.0
      %741 = vmatpush.msra.mxu0 0.0
      %742 = vmatpush.msra.mxu0 0.0
      %743 = vmatpush.msra.mxu0 0.0
      %744 = vmatpush.msra.mxu0 0.0
      %745 = vmatpush.msra.mxu0 %v692
      %746 = vmatpush.msra.mxu0 %v691
      %747 = vmatpush.msra.mxu0 %v690
      %748 = vmatpush.msra.mxu0 %v689
      %749 = vmatmul.f32.gmra.mxu0 %v722
      %v750 = vpop.f32.mrf.mxu0
      %v751 = vadd.f32 %v704, %v750
      %752 = vmatmul.f32.gmra.mxu0 %v725
      %v753 = vpop.f32.mrf.mxu0
      %v754 = vadd.f32 %v709, %v753
      %755 = vmatmul.f32.gmra.mxu0 %v728
      %v756 = vpop.f32.mrf.mxu0
      %v757 = vadd.f32 %v714, %v756
      %758 = vmatmul.f32.gmra.mxu0 %v731
      %v759 = vpop.f32.mrf.mxu0
      %v760 = vadd.f32 %v719, %v759
      %761 = vdwg.mxu0
      %vm762 = vcmp.gt.f32.partialorder %v751, 0.0
      %vm763 = vcmp.gt.f32.partialorder %v754, 0.0
      %vm764 = vcmp.gt.f32.partialorder %v757, 0.0
      %vm765 = vcmp.gt.f32.partialorder %v760, 0.0
      %v766 = vmul.f32 %v751, 0.2
      %v767 = vmul.f32 %v754, 0.2
      %v768 = vmul.f32 %v757, 0.2
      %v769 = vmul.f32 %v760, 0.2
      %v770 = vsel %vm762, %v751, %v766
      %v771 = vsel %vm763, %v754, %v767
      %v772 = vsel %vm764, %v757, %v768
      %v773 = vsel %vm765, %v760, %v769
      %774 = vst.msk [vmem:[%s359] sm:$0xff] %vm364, %v770
      %775 = vst.msk [vmem:[%s359 + $0x8] sm:$0xff] %vm364, %v771
      %776 = vst.msk [vmem:[%s359 + $0x10] sm:$0xff] %vm364, %v772
      %777 = vst.msk [vmem:[%s359 + $0x18] sm:$0xff] %vm364, %v773
      %p778 = scmp.lt.s32.totalorder %s21, 1
      %s779 = scalar_select %p778, %s21, 1
      %s780 = smul.addr %s779, 4
      %s781 = smul.addr %s780, 8
      %s782 = scalar_lea.vmem %s10, %s781
      // Predicated region
      $region61: #{tpu_custom_call.1} parent=59 // pred_check
        %p783 = pneg %p254
      $region62: #{tpu_custom_call.1} parent=59 // pred_check_branch
        %785 = sbr.rel (%p783) target = $region64
      $region63: #{tpu_custom_call.1} parent=59 // pred_region
        _
      $region64: #{tpu_custom_call.1} parent=59 // pred_fallthru
        _
    $region60: #{tpu_custom_call.1} parent=5 // pred_fallthru
      _
    %p786 = scmp.le.s32.totalorder 2, %s16
    // Predicated region
    $region65: #{tpu_custom_call.1} parent=5 // pred_check
      %p787 = pneg %p786
    $region66: #{tpu_custom_call.1} parent=5 // pred_check_branch
      %789 = sbr.rel (%p787) target = $region68
    $region67: #{tpu_custom_call.1} parent=5 // pred_region
      %s790 = ssub.s32 %s16, 2
      // Predicated region
      $region69: #{tpu_custom_call.1} parent=67 // pred_check
        %p791 = pneg %p260
      $region70: #{tpu_custom_call.1} parent=67 // pred_check_branch
        %793 = sbr.rel (%p791) target = $region72
      $region71: #{tpu_custom_call.1} parent=67 // pred_region
        %p794 = scmp.lt.s32.totalorder %s22, 1
        %s795 = scalar_select %p794, %s22, 1
        %s796 = smul.addr %s795, 4
        %s797 = smul.addr %s796, 8
        %s798 = scalar_lea.vmem %s10, %s797
      $region72: #{tpu_custom_call.1} parent=67 // pred_fallthru
        _
    $region68: #{tpu_custom_call.1} parent=5 // pred_fallthru
      _
  $region6: #{tpu_custom_call.1} parent=0 // loop_footer
    %s20 = sadd.s32 1, %s16
  $region7: #{tpu_custom_call.1} parent=0 // loop_footer_branch
    %15 = sbr.rel target = $region3
  $region8: #{tpu_custom_call.1} parent=0 // loop_exit
    _

</llo_original>
